<compile_context>
chip_gen: v7x
topology: tpu7x:2x2x1
jax: 0.10.0
libtpu: 0.0.40
codegen_flags: <defaults>
</compile_context>

<pallas_src>
import functools

import jax
import jax.numpy as jnp
from jax.experimental import pallas as pl
from jax.experimental.pallas import tpu as pltpu


# -----------------------------------------------------------------------------
# Per-generation knobs.
# -----------------------------------------------------------------------------
def _device_kind():
    try:
        return jax.devices()[0].device_kind.lower()
    except Exception:  # pragma: no cover - CPU/interpret fallback
        return ""


_KIND = _device_kind()

if "v7" in _KIND:
    # v7x: 64 MiB physical VMEM per core -> keep explicit headroom.
    _VMEM_LIMIT = 48 * 1024 * 1024
    _TM_LIN, _TN_LIN = 1024, 512
    _TM_DEC, _TV_DEC = 1024, 512
    _T_BLK = 16
elif ("v6" in _KIND) or ("v5e" in _KIND) or ("v5 lite" in _KIND) or ("v5lite" in _KIND):
    # v5e / v6e: 128 MiB physical VMEM -> bigger tiles, fewer grid steps,
    # less weight re-streaming.
    _VMEM_LIMIT = 100 * 1024 * 1024
    _TM_LIN, _TN_LIN = 1024, 1024
    _TM_DEC, _TV_DEC = 2048, 1024
    _T_BLK = 32
else:
    # Unknown generation: conservative tiles, compiler-default VMEM limit.
    _VMEM_LIMIT = None
    _TM_LIN, _TN_LIN = 512, 512
    _TM_DEC, _TV_DEC = 512, 512
    _T_BLK = 16

# bf16 gate nonlinearities only where the EUP supports bf16 (v6e / v7x);
# v5e (and older) keep f32.  c-state math stays f32 everywhere.
_GATE_DTYPE = jnp.bfloat16 if (("v6" in _KIND) or ("v7" in _KIND)) else jnp.float32

_NEG_PAD_BIAS = -1e30   # bias for padded vocab columns: exp(-1e30 - m) == 0


def _round_up(x, m):
    return ((x + m - 1) // m) * m


def _divisor_tile(dim, target, align):
    """Largest tile <= target that divides `dim` and is a multiple of `align`.

    Callers pad all large dims (rows to x8, hidden/vocab to x128), so an
    aligned divisor (at worst `align` itself) always exists for large dims;
    the full-dim fallback only triggers for small dims (<= target), where a
    full-extent block is legal and cheap."""
    if dim <= target:
        return dim
    t = (target // align) * align
    while t >= align:
        if dim % t == 0:
            return t
        t -= align
    return dim


def _pad_gate_cols(w, H, H_pad):
    """Pad the 4-gate (i|f|g|o) last dim 4H -> 4H_pad, zero-filling each gate."""
    if H_pad == H:
        return w
    lead = w.shape[:-1]
    w4 = w.reshape(lead + (4, H))
    w4 = jnp.pad(w4, [(0, 0)] * len(lead) + [(0, 0), (0, H_pad - H)])
    return w4.reshape(lead + (4 * H_pad,))


# -----------------------------------------------------------------------------
# Kernel 1: tiled linear  y = x @ w_t + b   (w_t pre-transposed: (K, N)).
# Used for the hoisted LSTM input projection; output stored bf16.
# -----------------------------------------------------------------------------
def linear_kernel(x_ref, w_ref, b_ref, o_ref):
    acc = jnp.dot(x_ref[...], w_ref[...], preferred_element_type=jnp.float32)
    o_ref[...] = (acc + b_ref[...]).astype(o_ref.dtype)


def linear(x, w_t, b, out_dtype=jnp.bfloat16,
           tm_target=_TM_LIN, tn_target=_TN_LIN):
    M, K = x.shape
    Kw, N = w_t.shape
    assert K == Kw
    tm = _divisor_tile(M, tm_target, 8)
    tn = _divisor_tile(N, tn_target, 128)
    grid = (M // tm, N // tn)
    # Rows outer / cols inner: the x tile (keyed on i) stays VMEM-resident for
    # the whole inner sweep; the weight is streamed once per row block, so a
    # large tm (usually M//tm == 1) keeps total weight traffic ~1x.
    return pl.pallas_call(
        linear_kernel,
        out_shape=jax.ShapeDtypeStruct((M, N), out_dtype),
        grid_spec=pltpu.PrefetchScalarGridSpec(
            num_scalar_prefetch=0,
            grid=grid,
            in_specs=[
                pl.BlockSpec((tm, K), lambda i, j: (i, 0)),
                pl.BlockSpec((K, tn), lambda i, j: (0, j)),
                pl.BlockSpec((1, tn), lambda i, j: (0, j)),
            ],
            out_specs=pl.BlockSpec((tm, tn), lambda i, j: (i, j)),
        ),
        compiler_params=pltpu.CompilerParams(
            dimension_semantics=("parallel", "parallel"),
            vmem_limit_bytes=_VMEM_LIMIT),
    )(x, w_t, b.reshape(1, N))


# -----------------------------------------------------------------------------
# Kernel 2: LSTM recurrence, time-blocked.  gates_in already contains
# x@W_ih^T + (b_ih + b_hh); the kernel only adds h_prev @ W_hh^T per step.
# PyTorch gate order: i, f, g, o ; c' = f*c + i*g ; h' = o*tanh(c').
# All shapes are pre-padded: B -> mult of 8, H -> mult of 128 (gate slices are
# tile-aligned views; padded hidden positions stay exactly 0).
# -----------------------------------------------------------------------------
def lstm_recurrence_kernel(gx_ref, h0_ref, c0_ref, whh_hbm,
                           y_ref, hT_ref, cT_ref,
                           h_sc, c_sc, w_sc, dma_sem, *, gate_dtype):
    blk = pl.program_id(0)

    @pl.when(blk == 0)
    def _():
        # Single-buffered weight: DMA W_hh^T from HBM into VMEM scratch once.
        cp = pltpu.make_async_copy(whh_hbm, w_sc, dma_sem)
        cp.start()
        h_sc[...] = h0_ref[...].astype(jnp.float32)
        c_sc[...] = c0_ref[...].astype(jnp.float32)
        cp.wait()

    w_hh = w_sc[...]                      # (Hp, 4Hp) bf16, VMEM-resident
    t_blk = y_ref.shape[0]
    H = h_sc.shape[-1]                    # padded hidden size (mult of 128)

    def step(i, carry):
        h_prev = h_sc[...]
        c_prev = c_sc[...]
        gates = (gx_ref[i].astype(jnp.float32)
                 + jnp.dot(h_prev.astype(jnp.bfloat16), w_hh,
                           preferred_element_type=jnp.float32))
        g = gates.astype(gate_dtype)      # bf16 nonlinearities on v6e/v7x
        i_g = jax.nn.sigmoid(g[:, 0 * H:1 * H]).astype(jnp.float32)
        f_g = jax.nn.sigmoid(g[:, 1 * H:2 * H]).astype(jnp.float32)
        g_g = jnp.tanh(g[:, 2 * H:3 * H]).astype(jnp.float32)
        o_g = jax.nn.sigmoid(g[:, 3 * H:4 * H]).astype(jnp.float32)
        c_new = f_g * c_prev + i_g * g_g                       # f32 accumulation
        h_new = o_g * jnp.tanh(c_new.astype(gate_dtype)).astype(jnp.float32)
        c_sc[...] = c_new
        h_sc[...] = h_new
        y_ref[i] = h_new.astype(y_ref.dtype)
        return carry

    # fori_loop with modest unroll: LLO scheduling visibility with bounded
    # register pressure (full Python unroll at t_blk=16..32 risks vreg spills).
    jax.lax.fori_loop(0, t_blk, step, 0, unroll=2)

    @pl.when(blk == pl.num_programs(0) - 1)
    def _():
        hT_ref[...] = h_sc[...].astype(hT_ref.dtype)
        cT_ref[...] = c_sc[...].astype(cT_ref.dtype)


def lstm_recurrence(gates_in, h0, c0, w_hh_t, t_blk_target=_T_BLK):
    T, B, G = gates_in.shape
    H = h0.shape[-1]
    t_blk = _divisor_tile(T, t_blk_target, 1)
    grid = (T // t_blk,)
    # TODO(synk): on v7x, add a leading size-2 "parallel" grid axis splitting
    # the batch across the two TensorCores (only worthwhile when B/2 >= 8).
    return pl.pallas_call(
        functools.partial(lstm_recurrence_kernel, gate_dtype=_GATE_DTYPE),
        out_shape=(
            jax.ShapeDtypeStruct((T, B, H), jnp.bfloat16),   # per-step hidden
            jax.ShapeDtypeStruct((B, H), jnp.float32),       # final h
            jax.ShapeDtypeStruct((B, H), jnp.float32),       # final c
        ),
        grid_spec=pltpu.PrefetchScalarGridSpec(
            num_scalar_prefetch=0,
            grid=grid,
            in_specs=[
                pl.BlockSpec((t_blk, B, G), lambda t: (t, 0, 0)),
                pl.BlockSpec((B, H), lambda t: (0, 0)),
                pl.BlockSpec((B, H), lambda t: (0, 0)),
                pl.BlockSpec(memory_space=pl.ANY),            # W_hh^T stays in HBM
            ],
            out_specs=[
                pl.BlockSpec((t_blk, B, H), lambda t: (t, 0, 0)),
                pl.BlockSpec((B, H), lambda t: (0, 0)),
                pl.BlockSpec((B, H), lambda t: (0, 0)),
            ],
            scratch_shapes=[
                pltpu.VMEM((B, H), jnp.float32),        # h state (f32)
                pltpu.VMEM((B, H), jnp.float32),        # c state (f32)
                pltpu.VMEM(w_hh_t.shape, jnp.bfloat16), # single-buffered W_hh^T
                pltpu.SemaphoreType.DMA(()),
            ],
        ),
        compiler_params=pltpu.CompilerParams(
            dimension_semantics=("arbitrary",),          # sequential recurrence
            vmem_limit_bytes=_VMEM_LIMIT),
    )(gates_in, h0, c0, w_hh_t)


# -----------------------------------------------------------------------------
# Kernel 3: fused decoder + log-softmax.  For each row block the vocab axis is
# swept twice (grid axis 1 has extent 2 * nv):
#   pass 1 (j <  nv): online logsumexp (running max / sum in VMEM scratch),
#                     NOTHING written to HBM;
#   pass 2 (j >= nv): logits recomputed on the MXU (nearly free vs HBM-bound)
#                     and logp = logits - lse written once.
# The output index map stays pinned at vocab-block 0 during pass 1 so no
# garbage block is ever flushed to HBM.
# -----------------------------------------------------------------------------
def decoder_logsoftmax_kernel(x_ref, w_ref, b_ref, out_ref, m_sc, s_sc, *, nv):
    j = pl.program_id(1)

    @pl.when(j == 0)
    def _():
        m_sc[...] = jnp.full(m_sc.shape, -jnp.inf, dtype=m_sc.dtype)
        s_sc[...] = jnp.zeros(s_sc.shape, dtype=s_sc.dtype)

    logits = (jnp.dot(x_ref[...], w_ref[...], preferred_element_type=jnp.float32)
              + b_ref[...])                              # (tm, tv) f32

    @pl.when(j < nv)
    def _():
        m_prev = m_sc[...]
        m_new = jnp.maximum(m_prev, jnp.max(logits, axis=-1, keepdims=True))
        s_sc[...] = (s_sc[...] * jnp.exp(m_prev - m_new)
                     + jnp.sum(jnp.exp(logits - m_new), axis=-1, keepdims=True))
        m_sc[...] = m_new

    @pl.when(j == nv - 1)
    def _():
        # End of pass 1: overwrite m_sc with the final logsumexp (only it is
        # read during pass 2).
        m_sc[...] = m_sc[...] + jnp.log(s_sc[...])

    @pl.when(j >= nv)
    def _():
        out_ref[...] = (logits - m_sc[...]).astype(out_ref.dtype)


def decode_logsoftmax(feat, w_t, b, tm_target=_TM_DEC, tv_target=_TV_DEC):
    N, H = feat.shape
    V = w_t.shape[1]
    tm = _divisor_tile(N, tm_target, 8)
    tv = _divisor_tile(V, tv_target, 128)
    nv = V // tv
    grid = (N // tm, 2 * nv)

    return pl.pallas_call(
        functools.partial(decoder_logsoftmax_kernel, nv=nv),
        out_shape=jax.ShapeDtypeStruct((N, V), jnp.float32),
        grid_spec=pltpu.PrefetchScalarGridSpec(
            num_scalar_prefetch=0,
            grid=grid,
            in_specs=[
                pl.BlockSpec((tm, H), lambda i, j: (i, 0)),       # resident per row block
                pl.BlockSpec((H, tv), lambda i, j: (0, j % nv)),
                pl.BlockSpec((1, tv), lambda i, j: (0, j % nv)),
            ],
            out_specs=pl.BlockSpec(
                (tm, tv), lambda i, j: (i, jnp.maximum(j - nv, 0))),
            scratch_shapes=[
                pltpu.VMEM((tm, 1), jnp.float32),   # running max, then lse
                pltpu.VMEM((tm, 1), jnp.float32),   # running sum
            ],
        ),
        compiler_params=pltpu.CompilerParams(
            dimension_semantics=("parallel", "arbitrary"),
            vmem_limit_bytes=_VMEM_LIMIT),
    )(feat, w_t, b.reshape(1, V))


# -----------------------------------------------------------------------------
# RNN language model (rnn_type='LSTM') in JAX, using the Pallas kernels above.
# -----------------------------------------------------------------------------
class RNNLM:
    def __init__(self, rnn_type, num_tokens, num_embeddings, num_hidden,
                 num_layers, dropout, is_tie_weights, key):
        assert rnn_type == 'LSTM'   # TODO(synk): GRU / RNN_TANH / RNN_RELU cell variants
        assert dropout == 0.0       # TODO(synk): dropout>0 needs pltpu PRNG; p=0 is identity
        self.rnn_type = rnn_type
        self.num_tokens = num_tokens
        self.num_embeddings = num_embeddings
        self.num_hidden = num_hidden
        self.num_layers = num_layers

        H, V, E = num_hidden, num_tokens, num_embeddings
        self.hidden_pad = Hp = _round_up(H, 128)
        self.vocab_pad = Vp = _round_up(V, 128)

        keys = jax.random.split(key, 2 + 4 * num_layers)
        init_range = 0.1
        # Embedding table stored bf16 so the gather feeds layer 0's bf16 matmul
        # directly (no extra (T*B, E) cast pass) and halves table read BW.
        self.encoder_w = jax.random.uniform(
            keys[0], (V, E), jnp.float32, -init_range, init_range
        ).astype(jnp.bfloat16)
        self.decoder_b = jnp.zeros((V,), jnp.float32)
        if is_tie_weights:
            if H != E:
                raise ValueError(
                    'When using the tied flag, num_hidden must equal num_embeddings')
            decoder_w = self.encoder_w                      # (V, H) bf16
        else:
            decoder_w = jax.random.uniform(
                keys[1], (V, H), jnp.float32, -init_range, init_range
            ).astype(jnp.bfloat16)
        # Reference (unpadded) copy + kernel copy (pre-transposed, padded).
        self.ref_decoder_w_t = decoder_w.T                  # (H, V) bf16
        self.decoder_w_t = jnp.pad(self.ref_decoder_w_t,
                                   ((0, Hp - H), (0, Vp - V)))
        # Padded vocab columns get a very negative bias -> contribute 0 to lse.
        self.decoder_b_pad = jnp.pad(self.decoder_b, (0, Vp - V),
                                     constant_values=_NEG_PAD_BIAS)

        # LSTM weights (PyTorch convention: uniform(-1/sqrt(H), 1/sqrt(H))),
        # pre-transposed (K, 4H), bf16, zero-padded per gate to (K_pad, 4Hp).
        k = 1.0 / float(H) ** 0.5
        self.w_ih_t, self.w_hh_t, self.b = [], [], []
        self.ref_w_ih_t, self.ref_w_hh_t, self.ref_b = [], [], []
        for l in range(num_layers):
            in_dim = E if l == 0 else H
            in_dim_pad = E if l == 0 else Hp
            kk = keys[2 + 4 * l: 2 + 4 * (l + 1)]
            w_ih = jax.random.uniform(kk[0], (4 * H, in_dim), jnp.float32, -k, k)
            w_hh = jax.random.uniform(kk[1], (4 * H, H), jnp.float32, -k, k)
            b_ih = jax.random.uniform(kk[2], (4 * H,), jnp.float32, -k, k)
            b_hh = jax.random.uniform(kk[3], (4 * H,), jnp.float32, -k, k)
            w_ih_t = w_ih.T.astype(jnp.bfloat16)            # (in_dim, 4H)
            w_hh_t = w_hh.T.astype(jnp.bfloat16)            # (H, 4H)
            bias = b_ih + b_hh                              # PyTorch adds both

            self.ref_w_ih_t.append(w_ih_t)
            self.ref_w_hh_t.append(w_hh_t)
            self.ref_b.append(bias)

            w_ih_p = _pad_gate_cols(w_ih_t, H, Hp)          # (in_dim, 4Hp)
            if in_dim_pad != in_dim:
                w_ih_p = jnp.pad(w_ih_p, ((0, in_dim_pad - in_dim), (0, 0)))
            w_hh_p = _pad_gate_cols(w_hh_t, H, Hp)          # (H, 4Hp)
            w_hh_p = jnp.pad(w_hh_p, ((0, Hp - H), (0, 0))) # (Hp, 4Hp)
            self.w_ih_t.append(w_ih_p)
            self.w_hh_t.append(w_hh_p)
            self.b.append(_pad_gate_cols(bias, H, Hp))      # (4Hp,) f32

    def init_hidden(self, batch_size):
        z = jnp.zeros((self.num_layers, batch_size, self.num_hidden), jnp.float32)
        return (z, z)

    def forward(self, x, hidden):
        T, B = x.shape
        H, Hp = self.num_hidden, self.hidden_pad
        V, Vp = self.num_tokens, self.vocab_pad
        Bp = _round_up(max(B, 1), 8)

        # Embedding lookup (glue) + dropout(p=0) = identity.  bf16 table -> bf16.
        emb = jnp.take(self.encoder_w, x, axis=0)            # (T, B, E) bf16
        if Bp != B:
            emb = jnp.pad(emb, ((0, 0), (0, Bp - B), (0, 0)))

        h0s, c0s = hidden                                     # (L, B, H) f32
        if Bp != B or Hp != H:
            pad = ((0, 0), (0, Bp - B), (0, Hp - H))
            h0s = jnp.pad(h0s, pad)
            c0s = jnp.pad(c0s, pad)

        out = emb
        new_h, new_c = [], []
        for l in range(self.num_layers):
            in_dim = out.shape[-1]
            # Hoisted input projection: one big (T*Bp, in_dim) x (in_dim, 4Hp)
            # matmul; output stays bf16 (largest per-layer intermediate).
            x2d = out.reshape(T * Bp, in_dim)
            gates_in = linear(x2d, self.w_ih_t[l], self.b[l])   # (T*Bp, 4Hp) bf16
            gates_in = gates_in.reshape(T, Bp, 4 * Hp)
            out, hT, cT = lstm_recurrence(gates_in, h0s[l], c0s[l], self.w_hh_t[l])
            new_h.append(hT[:B, :H])
            new_c.append(cT[:B, :H])

        feat = out.reshape(T * Bp, Hp)                        # bf16
        logp = decode_logsoftmax(feat, self.decoder_w_t, self.decoder_b_pad)
        if Bp != B or Vp != V:
            logp = logp.reshape(T, Bp, Vp)[:, :B, :V].reshape(T * B, V)
        return logp, (jnp.stack(new_h), jnp.stack(new_c))


# -----------------------------------------------------------------------------
# Pure-JAX f32 reference (sanity check of the Pallas kernels; uses the same
# bf16-quantized weight values, unpadded).
# -----------------------------------------------------------------------------
def reference_forward(model, x, hidden):
    emb = jnp.take(model.encoder_w.astype(jnp.float32), x, axis=0)
    h0s, c0s = hidden
    out = emb
    new_h, new_c = [], []
    H = model.num_hidden
    for l in range(model.num_layers):
        w_ih_t = model.ref_w_ih_t[l].astype(jnp.float32)
        w_hh_t = model.ref_w_hh_t[l].astype(jnp.float32)
        b = model.ref_b[l]

        def step(carry, x_t):
            h, c = carry
            g = x_t @ w_ih_t + h @ w_hh_t + b
            i = jax.nn.sigmoid(g[:, 0 * H:1 * H])
            f = jax.nn.sigmoid(g[:, 1 * H:2 * H])
            gg = jnp.tanh(g[:, 2 * H:3 * H])
            o = jax.nn.sigmoid(g[:, 3 * H:4 * H])
            c = f * c + i * gg
            h = o * jnp.tanh(c)
            return (h, c), h

        (hT, cT), ys = jax.lax.scan(step, (h0s[l], c0s[l]), out)
        out = ys
        new_h.append(hT)
        new_c.append(cT)
    feat = out.reshape(-1, H)
    logits = feat @ model.ref_decoder_w_t.astype(jnp.float32) + model.decoder_b
    logp = jax.nn.log_softmax(logits, axis=1)
    return logp, (jnp.stack(new_h), jnp.stack(new_c))


if __name__ == "__main__":
    key = jax.random.PRNGKey(0)
    num_tokens, num_embeddings, num_hidden = 64, 32, 32
    num_layers, T, B = 2, 8, 4

    model = RNNLM('LSTM', num_tokens, num_embeddings, num_hidden,
                  num_layers, dropout=0.0, is_tie_weights=True, key=key)

    tok_key = jax.random.fold_in(key, 123)
    x = jax.random.randint(tok_key, (T, B), 0, num_tokens, dtype=jnp.int32)
    hidden = model.init_hidden(B)

    logp, (h_out, c_out) = model.forward(x, hidden)
    logp = jax.block_until_ready(logp)
    h_out = jax.block_until_ready(h_out)
    c_out = jax.block_until_ready(c_out)

    # Sanity check vs pure-JAX f32 reference (kernels use bf16 MXU operands,
    # bf16 gates_in and, on v6e/v7x, bf16 gate nonlinearities).
    ref_logp, (ref_h, ref_c) = reference_forward(model, x, hidden)
    assert logp.shape == (T * B, num_tokens)
    assert h_out.shape == (num_layers, B, num_hidden)
    assert c_out.shape == (num_layers, B, num_hidden)
    assert jnp.allclose(logp, ref_logp, atol=3e-2, rtol=3e-2)
    assert jnp.allclose(h_out, ref_h, atol=3e-2, rtol=3e-2)
    assert jnp.allclose(c_out, ref_c, atol=3e-2, rtol=3e-2)

    print("KERNEL_OK")
</pallas_src>

<mosaic_0001>
module attributes {stable_mosaic.version = 11 : i64} {
  func.func @linear_kernel(%arg0: i32, %arg1: i32, %arg2: memref<64x32xbf16, #tpu.memory_space<vmem>>, %arg3: memref<32x512xbf16, #tpu.memory_space<vmem>>, %arg4: memref<1x512xf32, #tpu.memory_space<vmem>>, %arg5: memref<64x512xbf16, #tpu.memory_space<vmem>>) attributes {dimension_semantics = [#tpu.dimension_semantics<parallel>, #tpu.dimension_semantics<parallel>], iteration_bounds = array<i64: 1, 1>, scalar_prefetch = 0 : i64, scratch_operands = 0 : i64, tpu.core_type = #tpu.core_type<tc>, window_params = [{transform_indices = @transform_0, window_bounds = array<i64: 64, 32>}, {transform_indices = @transform_1, window_bounds = array<i64: 32, 512>}, {transform_indices = @transform_2, window_bounds = array<i64: 1, 512>}, {transform_indices = @transform_3, window_bounds = array<i64: 64, 512>}]} {
    %c0 = arith.constant 0 : index
    %c0_0 = arith.constant 0 : index
    %0 = vector.load %arg2[%c0, %c0_0] : memref<64x32xbf16, #tpu.memory_space<vmem>>, vector<64x32xbf16>
    %c0_1 = arith.constant 0 : index
    %c0_2 = arith.constant 0 : index
    %1 = vector.load %arg3[%c0_1, %c0_2] : memref<32x512xbf16, #tpu.memory_space<vmem>>, vector<32x512xbf16>
    %cst = arith.constant dense<0.000000e+00> : vector<64x512xf32>
    %2 = tpu.matmul %0, %1, %cst {dimension_numbers = #tpu.dot_dimension_numbers<[1], [0], [0], [1], [0, 0, 1, 1], [], []>} : vector<64x32xbf16>, vector<32x512xbf16>, vector<64x512xf32> -> vector<64x512xf32>
    %c0_3 = arith.constant 0 : index
    %c0_4 = arith.constant 0 : index
    %3 = vector.load %arg4[%c0_3, %c0_4] : memref<1x512xf32, #tpu.memory_space<vmem>>, vector<1x512xf32>
    %4 = vector.broadcast %3 : vector<1x512xf32> to vector<64x512xf32>
    %5 = arith.addf %2, %4 : vector<64x512xf32>
    %6 = arith.truncf %5 : vector<64x512xf32> to vector<64x512xbf16>
    %c0_5 = arith.constant 0 : index
    %c0_6 = arith.constant 0 : index
    %7 = vector.load %arg5[%c0_5, %c0_6] : memref<64x512xbf16, #tpu.memory_space<vmem>>, vector<64x512xbf16>
    tpu.vector_store %arg5[%c0_5, %c0_6], %6 {strides = array<i32>} : memref<64x512xbf16, #tpu.memory_space<vmem>>, vector<64x512xbf16>,
    return
  }
  func.func @transform_0(%arg0: i32, %arg1: i32) -> (i32, i32) {
    %c0_i32 = arith.constant 0 : i32
    %c0_i32_0 = arith.constant 0 : i32
    return %arg0, %c0_i32 : i32, i32
  }
  func.func @transform_1(%arg0: i32, %arg1: i32) -> (i32, i32) {
    %c0_i32 = arith.constant 0 : i32
    %c0_i32_0 = arith.constant 0 : i32
    return %c0_i32, %arg1 : i32, i32
  }
  func.func @transform_2(%arg0: i32, %arg1: i32) -> (i32, i32) {
    %c0_i32 = arith.constant 0 : i32
    %c0_i32_0 = arith.constant 0 : i32
    return %c0_i32, %arg1 : i32, i32
  }
  func.func @transform_3(%arg0: i32, %arg1: i32) -> (i32, i32) {
    %c0_i32 = arith.constant 0 : i32
    return %arg0, %arg1 : i32, i32
  }
}

</mosaic_0001>

<llo_original>
// kernel: tpu_custom_call.1
$region0: #{tpu_custom_call.1}
  #allocation0 [shape = 'u32[]', space=smem, size = 0x4, offset = 0x4, fixed_abs, tag = 'smem constant byte address 0x4 - core index']
  #allocation1 [shape = 'u32[144,128]{1,0:T(1,128)}', space=vmem, size = 0x12000, scoped, tag = 'internal scratch']
  %s0 = inlined_call_operand.vmem [shape: bf16[64,32], index: 0, kind: input, shape index: {}]
  %s1 = inlined_call_operand.hbm [shape: bf16[32,512], index: 1, kind: input, shape index: {}]
  %s2 = inlined_call_operand.vmem [shape: f32[1,512], index: 2, kind: input, shape index: {}]
  %s3 = inlined_call_operand.hbm [shape: bf16[64,512], index: 3, kind: output, shape index: {}]
  %s4 = sld [smem:[#allocation0]]
  $region26: #{tpu_custom_call.1} parent=0
    _
  %s6 = ssub.s32 1, %s4
  %s7 = scalar_select 0, %s6, %s4
  $region1: #{tpu_custom_call.1} parent=0
    #allocation2 [shape = 'u8[32768]{0}', space=vmem, size = 0x8000, scoped, tag = 'input window, operand 1, single buffered']
    #allocation3 [shape = 's32[1]{0}', space=sflag, size = 0x4, scoped, tag = 'scoped memory for tpu_custom_call.1']
    #allocation4 [shape = 's32[1]{0}', space=sflag, size = 0x4, scoped, tag = 'scoped memory for tpu_custom_call.1']
    #allocation5 [shape = 'u8[65536]{0}', space=vmem, size = 0x10000, scoped, tag = 'output window, operand 0, single buffered']
    %8 = vsyncpa [#allocation3], 0
    %9 = vsyncpa [#allocation4], 0
    // Predicated region
    $region2: #{tpu_custom_call.1} parent=1 // pred_check
      _
    $region3: #{tpu_custom_call.1} parent=1 // pred_check_branch
      %11 = sbr.rel (0) target = $region5
    $region4: #{tpu_custom_call.1} parent=1 // pred_region
      _
    $region5: #{tpu_custom_call.1} parent=1 // pred_fallthru
      _
    // Predicated region
    $region6: #{tpu_custom_call.1} parent=1 // pred_check
      _
    $region7: #{tpu_custom_call.1} parent=1 // pred_check_branch
      %13 = sbr.rel (0) target = $region9
    $region8: #{tpu_custom_call.1} parent=1 // pred_region
      %s15 = ssub.s32 1024, 1024
      %16 = vsyncadd [#allocation3], %s15
      %s17 = sshll.u32 [#allocation2], 4
      %s18 = int_to_ptr.vmem [resolvable:$true] %s17
      %23 = dma.hbm_to_vmem [thread:$0]  %s1, 1024, %s18, [#allocation3], 256, 256, 16
    $region9: #{tpu_custom_call.1} parent=1 // pred_fallthru
      _
    // Predicated region
    $region10: #{tpu_custom_call.1} parent=1 // pred_check
      _
    $region11: #{tpu_custom_call.1} parent=1 // pred_check_branch
      %25 = sbr.rel (0) target = $region13
    $region12: #{tpu_custom_call.1} parent=1 // pred_region
      _
    $region13: #{tpu_custom_call.1} parent=1 // pred_fallthru
      _
    // Predicated region
    $region14: #{tpu_custom_call.1} parent=1 // pred_check
      _
    $region15: #{tpu_custom_call.1} parent=1 // pred_check_branch
      %27 = sbr.rel (0) target = $region17
    $region16: #{tpu_custom_call.1} parent=1 // pred_region
      %28 = dma.done [#allocation3], 1024
    $region17: #{tpu_custom_call.1} parent=1 // pred_fallthru
      _
    %v30 = vld [vmem:[%s0] sm:$0xf]
    %v31 = vld [vmem:[%s0 + $0x4] sm:$0xf]
    %v32 = vld [vmem:[%s0 + $0x8] sm:$0xf]
    %v33 = vld [vmem:[%s0 + $0xc] sm:$0xf]
    %v34 = vld [vmem:[%s0 + $0x10] sm:$0xf]
    %v35 = vld [vmem:[%s0 + $0x14] sm:$0xf]
    %v36 = vld [vmem:[%s0 + $0x18] sm:$0xf]
    %v37 = vld [vmem:[%s0 + $0x1c] sm:$0xf]
    %v38 = vld [vmem:[#allocation2] sm:$0xff]
    %v39 = vld [vmem:[#allocation2 + $0x8] sm:$0xff]
    %v40 = vld [vmem:[#allocation2 + $0x10] sm:$0xff]
    %v41 = vld [vmem:[#allocation2 + $0x18] sm:$0xff]
    %v42 = vld [vmem:[#allocation2 + $0x20] sm:$0xff]
    %v43 = vld [vmem:[#allocation2 + $0x28] sm:$0xff]
    %v44 = vld [vmem:[#allocation2 + $0x30] sm:$0xff]
    %v45 = vld [vmem:[#allocation2 + $0x38] sm:$0xff]
    %v46 = vld [vmem:[%s2] sm:$0xf]
    %v48 = vlaneseq
    %v49 = vshrl.u32 %v48, 7
    %v50 = vsub.s32 0, %v49
    %v51 = vrot.slane %v46, %v50
    %v52 = vlaneseq
    %v53 = vshrl.u32 %v52, 7
    %v54 = vsub.s32 1, %v53
    %v55 = vrot.slane %v46, %v54
    %v56 = vlaneseq
    %v57 = vshrl.u32 %v56, 7
    %v58 = vsub.s32 2, %v57
    %v59 = vrot.slane %v46, %v58
    %v60 = vlaneseq
    %v61 = vshrl.u32 %v60, 7
    %v62 = vsub.s32 3, %v61
    %v63 = vrot.slane %v46, %v62
    %v76 = vunpack.c.l.b16 %v30
    %v77 = vunpack.c.l.b16 %v31
    %v78 = vunpack.c.l.b16 %v32
    %v79 = vunpack.c.l.b16 %v33
    %v80 = vunpack.c.l.b16 %v34
    %v81 = vunpack.c.l.b16 %v35
    %v82 = vunpack.c.l.b16 %v36
    %v83 = vunpack.c.l.b16 %v37
    %v84 = vpack.c.b16 %v77, %v76
    %v85 = vpack.c.b16 %v79, %v78
    %v86 = vpack.c.b16 %v81, %v80
    %v87 = vpack.c.b16 %v83, %v82
    %v96 = vunpack.c.l.b16 %v38
    %v97 = vunpack.c.h.b16 %v38
    %v98 = vunpack.c.l.b16 %v39
    %v99 = vunpack.c.h.b16 %v39
    %v100 = vunpack.c.l.b16 %v40
    %v101 = vunpack.c.h.b16 %v40
    %v102 = vunpack.c.l.b16 %v41
    %v103 = vunpack.c.h.b16 %v41
    %v104 = vunpack.c.l.b16 %v42
    %v105 = vunpack.c.h.b16 %v42
    %v106 = vunpack.c.l.b16 %v43
    %v107 = vunpack.c.h.b16 %v43
    %v108 = vunpack.c.l.b16 %v44
    %v109 = vunpack.c.h.b16 %v44
    %v110 = vunpack.c.l.b16 %v45
    %v111 = vunpack.c.h.b16 %v45
    %v112 = vpack.c.b16 %v100, %v96
    %v113 = vpack.c.b16 %v101, %v97
    %v114 = vpack.c.b16 %v102, %v98
    %v115 = vpack.c.b16 %v103, %v99
    %v116 = vpack.c.b16 %v108, %v104
    %v117 = vpack.c.b16 %v109, %v105
    %v118 = vpack.c.b16 %v110, %v106
    %v119 = vpack.c.b16 %v111, %v107
    %vm128 = vcmask 261120
    %v130 = vsel %vm128, %v84, 0
    %v133 = vsel %vm128, %v85, 0
    %v136 = vsel %vm128, %v86, 0
    %v139 = vsel %vm128, %v87, 0
    %141 = vmatprep.subr.bf16.mxu0 %v113
    %142 = vmatpush1.bf16.msra.mxu0 %v112
    %143 = vmatprep.subr.bf16.mxu0 %v117
    %144 = vmatpush1.bf16.msra.mxu0 %v116
    %145 = vmatprep.subr.bf16.mxu0 0
    %146 = vmatpush1.bf16.msra.mxu0 0
    %147 = vmatprep.subr.bf16.mxu0 0
    %148 = vmatpush1.bf16.msra.mxu0 0
    %149 = vmatprep.subr.bf16.mxu0 0
    %150 = vmatpush1.bf16.msra.mxu0 0
    %151 = vmatprep.subr.bf16.mxu0 0
    %152 = vmatpush1.bf16.msra.mxu0 0
    %153 = vmatprep.subr.bf16.mxu0 0
    %154 = vmatpush1.bf16.msra.mxu0 0
    %155 = vmatprep.subr.bf16.mxu0 0
    %156 = vmatpush1.bf16.msra.mxu0 0
    %157 = vmatprep.subr.bf16.mxu0 0
    %158 = vmatpush1.bf16.msra.mxu0 0
    %159 = vmatprep.subr.bf16.mxu0 0
    %160 = vmatpush1.bf16.msra.mxu0 0
    %161 = vmatprep.subr.bf16.mxu0 0
    %162 = vmatpush1.bf16.msra.mxu0 0
    %163 = vmatprep.subr.bf16.mxu0 0
    %164 = vmatpush1.bf16.msra.mxu0 0
    %165 = vmatprep.subr.bf16.mxu0 0
    %166 = vmatpush1.bf16.msra.mxu0 0
    %167 = vmatprep.subr.bf16.mxu0 0
    %168 = vmatpush1.bf16.msra.mxu0 0
    %169 = vmatprep.subr.bf16.mxu0 0
    %170 = vmatpush1.bf16.msra.mxu0 0
    %171 = vmatprep.subr.bf16.mxu0 0
    %172 = vmatpush1.bf16.msra.mxu0 0
    %173 = vmatprep.mubr.bf16.mxu0 0
    %174 = vmatmul.mubr.bf16.gmra.mrb[0].mxu0 %v130
    %v175 = vpop.f32.mrb[0].mxu0
    %v176 = vadd.f32 %v51, %v175
    %v177 = vpop.f32.mrb[0].mxu0
    %v178 = vadd.f32 %v55, %v177
    %v179 = vpop.f32.mrb[0].mxu0
    %v180 = vadd.f32 %v51, %v179
    %v181 = vpop.f32.mrb[0].mxu0
    %v182 = vadd.f32 %v55, %v181
    %183 = vmatprep.mubr.bf16.mxu0 0
    %184 = vmatmul.mubr.bf16.gmra.mrb[0].mxu0 %v133
    %v185 = vpop.f32.mrb[0].mxu0
    %v186 = vadd.f32 %v51, %v185
    %v187 = vpop.f32.mrb[0].mxu0
    %v188 = vadd.f32 %v55, %v187
    %v189 = vpop.f32.mrb[0].mxu0
    %v190 = vadd.f32 %v51, %v189
    %v191 = vpop.f32.mrb[0].mxu0
    %v192 = vadd.f32 %v55, %v191
    %193 = vmatprep.mubr.bf16.mxu0 0
    %194 = vmatmul.mubr.bf16.gmra.mrb[0].mxu0 %v136
    %v195 = vpop.f32.mrb[0].mxu0
    %v196 = vadd.f32 %v51, %v195
    %v197 = vpop.f32.mrb[0].mxu0
    %v198 = vadd.f32 %v55, %v197
    %v199 = vpop.f32.mrb[0].mxu0
    %v200 = vadd.f32 %v51, %v199
    %v201 = vpop.f32.mrb[0].mxu0
    %v202 = vadd.f32 %v55, %v201
    %203 = vmatprep.mubr.bf16.mxu0 0
    %204 = vmatmul.mubr.bf16.gmra.mrb[0].mxu0 %v139
    %v205 = vpop.f32.mrb[0].mxu0
    %v206 = vadd.f32 %v51, %v205
    %v207 = vpop.f32.mrb[0].mxu0
    %v208 = vadd.f32 %v55, %v207
    %v209 = vpop.f32.mrb[0].mxu0
    %v210 = vadd.f32 %v51, %v209
    %v211 = vpop.f32.mrb[0].mxu0
    %v212 = vadd.f32 %v55, %v211
    %213 = vdwg.mxu0
    %214 = vmatprep.subr.bf16.mxu0 %v115
    %215 = vmatpush1.bf16.msra.mxu0 %v114
    %216 = vmatprep.subr.bf16.mxu0 %v119
    %217 = vmatpush1.bf16.msra.mxu0 %v118
    %218 = vmatprep.subr.bf16.mxu0 0
    %219 = vmatpush1.bf16.msra.mxu0 0
    %220 = vmatprep.subr.bf16.mxu0 0
    %221 = vmatpush1.bf16.msra.mxu0 0
    %222 = vmatprep.subr.bf16.mxu0 0
    %223 = vmatpush1.bf16.msra.mxu0 0
    %224 = vmatprep.subr.bf16.mxu0 0
    %225 = vmatpush1.bf16.msra.mxu0 0
    %226 = vmatprep.subr.bf16.mxu0 0
    %227 = vmatpush1.bf16.msra.mxu0 0
    %228 = vmatprep.subr.bf16.mxu0 0
    %229 = vmatpush1.bf16.msra.mxu0 0
    %230 = vmatprep.subr.bf16.mxu0 0
    %231 = vmatpush1.bf16.msra.mxu0 0
    %232 = vmatprep.subr.bf16.mxu0 0
    %233 = vmatpush1.bf16.msra.mxu0 0
    %234 = vmatprep.subr.bf16.mxu0 0
    %235 = vmatpush1.bf16.msra.mxu0 0
    %236 = vmatprep.subr.bf16.mxu0 0
    %237 = vmatpush1.bf16.msra.mxu0 0
    %238 = vmatprep.subr.bf16.mxu0 0
    %239 = vmatpush1.bf16.msra.mxu0 0
    %240 = vmatprep.subr.bf16.mxu0 0
    %241 = vmatpush1.bf16.msra.mxu0 0
    %242 = vmatprep.subr.bf16.mxu0 0
    %243 = vmatpush1.bf16.msra.mxu0 0
    %244 = vmatprep.subr.bf16.mxu0 0
    %245 = vmatpush1.bf16.msra.mxu0 0
    %246 = vmatprep.mubr.bf16.mxu0 0
    %247 = vmatmul.mubr.bf16.gmra.mrb[0].mxu0 %v130
    %v248 = vpop.f32.mrb[0].mxu0
    %v249 = vadd.f32 %v59, %v248
    %v250 = vpop.f32.mrb[0].mxu0
    %v251 = vadd.f32 %v63, %v250
    %v252 = vpop.f32.mrb[0].mxu0
    %v253 = vadd.f32 %v59, %v252
    %v254 = vpop.f32.mrb[0].mxu0
    %v255 = vadd.f32 %v63, %v254
    %256 = vmatprep.mubr.bf16.mxu0 0
    %257 = vmatmul.mubr.bf16.gmra.mrb[0].mxu0 %v133
    %v258 = vpop.f32.mrb[0].mxu0
    %v259 = vadd.f32 %v59, %v258
    %v260 = vpop.f32.mrb[0].mxu0
    %v261 = vadd.f32 %v63, %v260
    %v262 = vpop.f32.mrb[0].mxu0
    %v263 = vadd.f32 %v59, %v262
    %v264 = vpop.f32.mrb[0].mxu0
    %v265 = vadd.f32 %v63, %v264
    %266 = vmatprep.mubr.bf16.mxu0 0
    %267 = vmatmul.mubr.bf16.gmra.mrb[0].mxu0 %v136
    %v268 = vpop.f32.mrb[0].mxu0
    %v269 = vadd.f32 %v59, %v268
    %v270 = vpop.f32.mrb[0].mxu0
    %v271 = vadd.f32 %v63, %v270
    %v272 = vpop.f32.mrb[0].mxu0
    %v273 = vadd.f32 %v59, %v272
    %v274 = vpop.f32.mrb[0].mxu0
    %v275 = vadd.f32 %v63, %v274
    %276 = vmatprep.mubr.bf16.mxu0 0
    %277 = vmatmul.mubr.bf16.gmra.mrb[0].mxu0 %v139
    %v278 = vpop.f32.mrb[0].mxu0
    %v279 = vadd.f32 %v59, %v278
    %v280 = vpop.f32.mrb[0].mxu0
    %v281 = vadd.f32 %v63, %v280
    %v282 = vpop.f32.mrb[0].mxu0
    %v283 = vadd.f32 %v59, %v282
    %v284 = vpop.f32.mrb[0].mxu0
    %v285 = vadd.f32 %v63, %v284
    %286 = vdwg.mxu0
    %v287 = vpack.c.bf16 %v180, %v176
    %v288 = vpack.c.bf16 %v182, %v178
    %v289 = vpack.c.bf16 %v253, %v249
    %v290 = vpack.c.bf16 %v255, %v251
    %v291 = vpack.c.bf16 %v190, %v186
    %v292 = vpack.c.bf16 %v192, %v188
    %v293 = vpack.c.bf16 %v263, %v259
    %v294 = vpack.c.bf16 %v265, %v261
    %v295 = vpack.c.bf16 %v200, %v196
    %v296 = vpack.c.bf16 %v202, %v198
    %v297 = vpack.c.bf16 %v273, %v269
    %v298 = vpack.c.bf16 %v275, %v271
    %v299 = vpack.c.bf16 %v210, %v206
    %v300 = vpack.c.bf16 %v212, %v208
    %v301 = vpack.c.bf16 %v283, %v279
    %v302 = vpack.c.bf16 %v285, %v281
    %v319 = vunpack.c.l.b16 %v287
    %v320 = vunpack.c.l.b16 %v288
    %v321 = vunpack.c.l.b16 %v289
    %v322 = vunpack.c.l.b16 %v290
    %v323 = vunpack.c.h.b16 %v287
    %v324 = vunpack.c.h.b16 %v288
    %v325 = vunpack.c.h.b16 %v289
    %v326 = vunpack.c.h.b16 %v290
    %v327 = vunpack.c.l.b16 %v291
    %v328 = vunpack.c.l.b16 %v292
    %v329 = vunpack.c.l.b16 %v293
    %v330 = vunpack.c.l.b16 %v294
    %v331 = vunpack.c.h.b16 %v291
    %v332 = vunpack.c.h.b16 %v292
    %v333 = vunpack.c.h.b16 %v293
    %v334 = vunpack.c.h.b16 %v294
    %v335 = vunpack.c.l.b16 %v295
    %v336 = vunpack.c.l.b16 %v296
    %v337 = vunpack.c.l.b16 %v297
    %v338 = vunpack.c.l.b16 %v298
    %v339 = vunpack.c.h.b16 %v295
    %v340 = vunpack.c.h.b16 %v296
    %v341 = vunpack.c.h.b16 %v297
    %v342 = vunpack.c.h.b16 %v298
    %v343 = vunpack.c.l.b16 %v299
    %v344 = vunpack.c.l.b16 %v300
    %v345 = vunpack.c.l.b16 %v301
    %v346 = vunpack.c.l.b16 %v302
    %v347 = vunpack.c.h.b16 %v299
    %v348 = vunpack.c.h.b16 %v300
    %v349 = vunpack.c.h.b16 %v301
    %v350 = vunpack.c.h.b16 %v302
    %v351 = vpack.c.b16 %v320, %v319
    %v352 = vpack.c.b16 %v322, %v321
    %v353 = vpack.c.b16 %v324, %v323
    %v354 = vpack.c.b16 %v326, %v325
    %v355 = vpack.c.b16 %v328, %v327
    %v356 = vpack.c.b16 %v330, %v329
    %v357 = vpack.c.b16 %v332, %v331
    %v358 = vpack.c.b16 %v334, %v333
    %v359 = vpack.c.b16 %v336, %v335
    %v360 = vpack.c.b16 %v338, %v337
    %v361 = vpack.c.b16 %v340, %v339
    %v362 = vpack.c.b16 %v342, %v341
    %v363 = vpack.c.b16 %v344, %v343
    %v364 = vpack.c.b16 %v346, %v345
    %v365 = vpack.c.b16 %v348, %v347
    %v366 = vpack.c.b16 %v350, %v349
    %383 = vst [vmem:[#allocation5] sm:$0xff] %v351
    %384 = vst [vmem:[#allocation5 + $0x8] sm:$0xff] %v352
    %385 = vst [vmem:[#allocation5 + $0x10] sm:$0xff] %v353
    %386 = vst [vmem:[#allocation5 + $0x18] sm:$0xff] %v354
    %387 = vst [vmem:[#allocation5 + $0x20] sm:$0xff] %v355
    %388 = vst [vmem:[#allocation5 + $0x28] sm:$0xff] %v356
    %389 = vst [vmem:[#allocation5 + $0x30] sm:$0xff] %v357
    %390 = vst [vmem:[#allocation5 + $0x38] sm:$0xff] %v358
    %391 = vst [vmem:[#allocation5 + $0x40] sm:$0xff] %v359
    %392 = vst [vmem:[#allocation5 + $0x48] sm:$0xff] %v360
    %393 = vst [vmem:[#allocation5 + $0x50] sm:$0xff] %v361
    %394 = vst [vmem:[#allocation5 + $0x58] sm:$0xff] %v362
    %395 = vst [vmem:[#allocation5 + $0x60] sm:$0xff] %v363
    %396 = vst [vmem:[#allocation5 + $0x68] sm:$0xff] %v364
    %397 = vst [vmem:[#allocation5 + $0x70] sm:$0xff] %v365
    %398 = vst [vmem:[#allocation5 + $0x78] sm:$0xff] %v366
    // Predicated region
    $region18: #{tpu_custom_call.1} parent=1 // pred_check
      _
    $region19: #{tpu_custom_call.1} parent=1 // pred_check_branch
      %400 = sbr.rel (0) target = $region21
    $region20: #{tpu_custom_call.1} parent=1 // pred_region
      %s402 = ssub.s32 2048, 2048
      %403 = vsyncadd [#allocation4], %s402
      %s404 = sshll.u32 [#allocation5], 4
      %s405 = int_to_ptr.vmem [resolvable:$true] %s404
      %410 = dma.vmem_to_hbm [thread:$0]  %s405, 2048, %s3, [#allocation4], 256, 256, 16
    $region21: #{tpu_custom_call.1} parent=1 // pred_fallthru
      _
    // Predicated region
    $region22: #{tpu_custom_call.1} parent=1 // pred_check
      _
    $region23: #{tpu_custom_call.1} parent=1 // pred_check_branch
      %412 = sbr.rel (0) target = $region25
    $region24: #{tpu_custom_call.1} parent=1 // pred_region
      %413 = dma.done [#allocation4], 2048
    $region25: #{tpu_custom_call.1} parent=1 // pred_fallthru
      _
    %414 = vsyncpa [#allocation3], 1
    %415 = vsyncpa [#allocation4], 1

</llo_original>
